<compile_context>
chip_gen: v7x
topology: tpu7x:2x2x1
jax: 0.10.0
libtpu: 0.0.40
codegen_flags: <defaults>
</compile_context>

<pallas_src>
import jax
import jax.numpy as jnp
import numpy as np
from jax import lax
from jax.experimental import pallas as pl
from jax.experimental.pallas import tpu as pltpu

LANE = 128            # lanes per row of the N axis
SUB = 8               # sublane chunk processed per inner-loop step (one vreg)
MAX_BLOCK_ROWS = 512  # (3+9+9) * 512 * 128 * 4B * 2buf ~ 11 MiB VMEM

_HALF_PI = float(np.pi / 2.0)
_INV_PI = float(1.0 / np.pi)


def so3_prior_kernel(v_ref, m_ref, o_ref):
    # v_ref: (3, BR, 128), m_ref: (9, BR, 128), o_ref: (9, BR, 128)
    block_rows = v_ref.shape[1]
    n_chunks = block_rows // SUB

    def body(c, carry):
        r0 = pl.multiple_of(c * SUB, SUB)
        sl = pl.ds(r0, SUB)

        vx = v_ref[0, sl, :]
        vy = v_ref[1, sl, :]
        vz = v_ref[2, sl, :]

        # theta = ||v||, u = v / theta   (theta == 0 -> NaN, matching torch)
        t2 = vx * vx + vy * vy + vz * vz
        inv_t = lax.rsqrt(t2)                       # EUP
        ux, uy, uz = vx * inv_t, vy * inv_t, vz * inv_t

        # Half-angle trig: one sin() polynomial instead of sin() + cos().
        #   c1 = 1 - cos(theta) = 2 sin^2(theta/2)
        #   s  =     sin(theta) = 2 sin(theta/2) cos(theta/2)
        # cos(theta/2) = sign * sqrt(1 - sin^2(theta/2)); the sign flips each
        # time theta/2 crosses an odd multiple of pi/2 (branch-free fix-up so
        # theta > pi remains correct).
        h = 0.5 * (t2 * inv_t)                      # theta / 2
        sh = jnp.sin(h)
        q = jnp.floor((h + _HALF_PI) * _INV_PI)
        sign = 1.0 - 2.0 * (q - 2.0 * jnp.floor(0.5 * q))
        ch = sign * jnp.sqrt(jnp.maximum(1.0 - sh * sh, 0.0))
        s = 2.0 * sh * ch
        c1 = 2.0 * sh * sh

        # K = map_to_lie_algebra(u); K@K written element-wise.
        # Unit-norm identity: ux^2 + uy^2 + uz^2 == 1 => -(uy^2+uz^2) = ux^2-1.
        ux2, uy2, uz2 = ux * ux, uy * uy, uz * uz
        kk00 = ux2 - 1.0
        kk11 = uy2 - 1.0
        kk22 = uz2 - 1.0
        kk01 = ux * uy
        kk02 = ux * uz
        kk12 = uy * uz

        sux, suy, suz = s * ux, s * uy, s * uz
        c01, c02, c12 = c1 * kk01, c1 * kk02, c1 * kk12

        # R = I + sin(theta) * K + (1 - cos(theta)) * (K @ K)
        r00 = 1.0 + c1 * kk00
        r01 = c01 - suz
        r02 = c02 + suy
        r10 = c01 + suz
        r11 = 1.0 + c1 * kk11
        r12 = c12 - sux
        r20 = c02 - suy
        r21 = c12 + sux
        r22 = 1.0 + c1 * kk22
        R = ((r00, r01, r02), (r10, r11, r12), (r20, r21, r22))

        # Z = mu_lie @ R as 9 lane/sublane-wise dot products; store rows directly.
        for i in range(3):
            mi0 = m_ref[3 * i + 0, sl, :]
            mi1 = m_ref[3 * i + 1, sl, :]
            mi2 = m_ref[3 * i + 2, sl, :]
            for j in range(3):
                o_ref[3 * i + j, sl, :] = (
                    mi0 * R[0][j] + mi1 * R[1][j] + mi2 * R[2][j]
                )
        return carry

    unroll = True if n_chunks <= 4 else 4
    lax.fori_loop(0, n_chunks, body, 0, unroll=unroll)


def _round_up(a, b):
    return ((a + b - 1) // b) * b


def _cdiv(a, b):
    return -(-a // b)


def _num_tensorcores():
    """Best-effort TensorCore count (2 on v7x, 1 on v5e/v6e)."""
    try:
        info = pltpu.get_tpu_info()
    except Exception:
        return 1
    for name in ("num_cores", "core_count", "num_tensorcores",
                 "tensorcore_count", "cores_per_chip"):
        val = getattr(info, name, None)
        if isinstance(val, (int, np.integer)) and int(val) > 0:
            return int(val)
    return 1


def _choose_blocking(rows, max_block_rows, num_cores):
    """Near-equal blocks; split across TensorCores only when it pays off."""
    grid_steps = max(_cdiv(rows, max_block_rows), 1)
    if num_cores > 1 and rows >= num_cores * SUB:
        grid_steps = _round_up(grid_steps, num_cores)   # balanced multi-TC split
    block_rows = _round_up(_cdiv(rows, grid_steps), SUB)
    block_rows = min(block_rows, _round_up(max_block_rows, SUB))
    grid_steps = _cdiv(rows, block_rows)
    return block_rows, grid_steps


def so3_prior_forward(mu_lie, v, *, max_block_rows=MAX_BLOCK_ROWS):
    """mu_lie: (n, B, 3, 3), v: (n, B, 3)  ->  (n*B, 9)"""
    n, B = v.shape[0], v.shape[1]
    N = n * B
    dtype = v.dtype

    n_pad = _round_up(N, LANE)            # at most 127 padded elements
    rows = n_pad // LANE                  # number of 128-lane rows
    num_cores = _num_tensorcores()
    block_rows, grid_steps = _choose_blocking(rows, max_block_rows, num_cores)

    # (n, B, 3) -> (3, N) and (n, B, 3, 3) -> (9, N).
    # TODO(synk): these transposes (and the final one) are forced by the torch
    # module's (N,3)/(N,9) row layouts; if producer/consumer adopt (3,N)/(9,N)
    # natively, or mu is passed as axis-angle with its rodrigues fused here,
    # they disappear and end-to-end HBM traffic roughly halves.
    v_flat = v.reshape(N, 3)
    m_flat = mu_lie.reshape(N, 9)
    if n_pad != N:
        # Pad v with ones so padded lanes stay finite (they are sliced away).
        v_flat = jnp.pad(v_flat, ((0, n_pad - N), (0, 0)), constant_values=1.0)
        m_flat = jnp.pad(m_flat, ((0, n_pad - N), (0, 0)))
    v3 = jnp.transpose(v_flat).reshape(3, rows, LANE)
    m9 = jnp.transpose(m_flat).reshape(9, rows, LANE)

    out = pl.pallas_call(
        so3_prior_kernel,
        out_shape=jax.ShapeDtypeStruct((9, rows, LANE), dtype),
        grid=(grid_steps,),
        in_specs=[
            pl.BlockSpec((3, block_rows, LANE), lambda i: (0, i, 0)),
            pl.BlockSpec((9, block_rows, LANE), lambda i: (0, i, 0)),
        ],
        out_specs=pl.BlockSpec((9, block_rows, LANE), lambda i: (0, i, 0)),
        compiler_params=pltpu.CompilerParams(
            dimension_semantics=("parallel",),
            vmem_limit_bytes=32 * 1024 * 1024,
        ),
    )(v3, m9)

    # TODO(synk): if downstream tolerates bf16 output (v5e is HBM-bound), cast
    # in-kernel before the stores and switch the sublane multiple to 16.
    return jnp.transpose(out.reshape(9, n_pad)[:, :N])      # (N, 9)


# ---------------- pure-JAX reference (mirrors the torch code) ----------------
def _map_to_lie_algebra_ref(v):
    Rx = jnp.array([[0.0, 0.0, 0.0], [0.0, 0.0, -1.0], [0.0, 1.0, 0.0]], v.dtype)
    Ry = jnp.array([[0.0, 0.0, 1.0], [0.0, 0.0, 0.0], [-1.0, 0.0, 0.0]], v.dtype)
    Rz = jnp.array([[0.0, -1.0, 0.0], [1.0, 0.0, 0.0], [0.0, 0.0, 0.0]], v.dtype)
    return (Rx * v[..., 0, None, None] + Ry * v[..., 1, None, None]
            + Rz * v[..., 2, None, None])


def _rodrigues_ref(v):
    theta = jnp.linalg.norm(v, axis=-1, keepdims=True)
    K = _map_to_lie_algebra_ref(v / theta)
    Id = jnp.eye(3, dtype=v.dtype)
    return (Id + jnp.sin(theta)[..., None] * K
            + (1.0 - jnp.cos(theta))[..., None] * (K @ K))


def so3_prior_ref(mu_lie, v):
    z = mu_lie @ _rodrigues_ref(v)
    z = z.reshape(-1, 3, 3)
    return z.reshape(z.shape[0], -1)


def _check(n_samples, batch, seed):
    key = jax.random.PRNGKey(seed)
    k1, k2 = jax.random.split(key)
    mu_axis = 0.3 * jax.random.normal(k1, (n_samples, batch, 3), jnp.float32)
    mu_lie = _rodrigues_ref(mu_axis)                                     # (n, B, 3, 3)
    v = 0.5 * jax.random.normal(k2, (n_samples, batch, 3), jnp.float32)  # (n, B, 3)

    z = jax.block_until_ready(so3_prior_forward(mu_lie, v))
    z_ref = so3_prior_ref(mu_lie, v)
    np.testing.assert_allclose(np.asarray(z), np.asarray(z_ref),
                               rtol=1e-4, atol=1e-5)
    assert z.shape == (n_samples * batch, 9)


if __name__ == "__main__":
    # SO3Prior(k=10, n_samples=2): no learnable parameters, only inputs.
    _check(n_samples=2, batch=8, seed=0)       # N=16: single ragged block (pad path)
    _check(n_samples=2, batch=2048, seed=0)    # N=4096: pad-free, multi-chunk loop
    print("KERNEL_OK")
</pallas_src>

<mosaic_0001>
module attributes {stable_mosaic.version = 11 : i64} {
  func.func @so3_prior_kernel(%arg0: i32, %arg1: memref<3x8x128xf32, #tpu.memory_space<vmem>>, %arg2: memref<9x8x128xf32, #tpu.memory_space<vmem>>, %arg3: memref<9x8x128xf32, #tpu.memory_space<vmem>>) attributes {dimension_semantics = [#tpu.dimension_semantics<parallel>], iteration_bounds = array<i64: 1>, scalar_prefetch = 0 : i64, scratch_operands = 0 : i64, tpu.core_type = #tpu.core_type<tc>, window_params = [{transform_indices = @transform_0, window_bounds = array<i64: 3, 8, 128>}, {transform_indices = @transform_1, window_bounds = array<i64: 9, 8, 128>}, {transform_indices = @transform_2, window_bounds = array<i64: 9, 8, 128>}]} {
    %c0_i32 = arith.constant 0 : i32
    %c8_i32 = arith.constant 8 : i32
    %0 = arith.muli %c0_i32, %c8_i32 : i32
    %1 = tpu.assume_multiple %0, 8 : i32
    %c0 = arith.constant 0 : index
    %2 = arith.index_cast %1 : i32 to index
    %c0_0 = arith.constant 0 : index
    %3 = vector.load %arg1[%c0, %2, %c0_0] : memref<3x8x128xf32, #tpu.memory_space<vmem>>, vector<1x8x128xf32>
    %4 = vector.shape_cast %3 : vector<1x8x128xf32> to vector<8x128xf32>
    %c1 = arith.constant 1 : index
    %5 = arith.index_cast %1 : i32 to index
    %c0_1 = arith.constant 0 : index
    %6 = vector.load %arg1[%c1, %5, %c0_1] : memref<3x8x128xf32, #tpu.memory_space<vmem>>, vector<1x8x128xf32>
    %7 = vector.shape_cast %6 : vector<1x8x128xf32> to vector<8x128xf32>
    %c2 = arith.constant 2 : index
    %8 = arith.index_cast %1 : i32 to index
    %c0_2 = arith.constant 0 : index
    %9 = vector.load %arg1[%c2, %8, %c0_2] : memref<3x8x128xf32, #tpu.memory_space<vmem>>, vector<1x8x128xf32>
    %10 = vector.shape_cast %9 : vector<1x8x128xf32> to vector<8x128xf32>
    %11 = arith.mulf %4, %4 : vector<8x128xf32>
    %12 = arith.mulf %7, %7 : vector<8x128xf32>
    %13 = arith.addf %11, %12 : vector<8x128xf32>
    %14 = arith.mulf %10, %10 : vector<8x128xf32>
    %15 = arith.addf %13, %14 : vector<8x128xf32>
    %16 = math.rsqrt %15 : vector<8x128xf32>
    %17 = arith.mulf %4, %16 : vector<8x128xf32>
    %18 = arith.mulf %7, %16 : vector<8x128xf32>
    %19 = arith.mulf %10, %16 : vector<8x128xf32>
    %20 = arith.mulf %15, %16 : vector<8x128xf32>
    %cst = arith.constant 5.000000e-01 : f32
    %21 = vector.broadcast %cst : f32 to vector<8x128xf32>
    %22 = arith.mulf %21, %20 : vector<8x128xf32>
    %23 = math.sin %22 : vector<8x128xf32>
    %cst_3 = arith.constant 1.57079637 : f32
    %24 = vector.broadcast %cst_3 : f32 to vector<8x128xf32>
    %25 = arith.addf %22, %24 : vector<8x128xf32>
    %cst_4 = arith.constant 0.318309873 : f32
    %26 = vector.broadcast %cst_4 : f32 to vector<8x128xf32>
    %27 = arith.mulf %25, %26 : vector<8x128xf32>
    %28 = math.floor %27 : vector<8x128xf32>
    %cst_5 = arith.constant 5.000000e-01 : f32
    %29 = vector.broadcast %cst_5 : f32 to vector<8x128xf32>
    %30 = arith.mulf %29, %28 : vector<8x128xf32>
    %31 = math.floor %30 : vector<8x128xf32>
    %cst_6 = arith.constant 2.000000e+00 : f32
    %32 = vector.broadcast %cst_6 : f32 to vector<8x128xf32>
    %33 = arith.mulf %32, %31 : vector<8x128xf32>
    %34 = arith.subf %28, %33 : vector<8x128xf32>
    %cst_7 = arith.constant 2.000000e+00 : f32
    %35 = vector.broadcast %cst_7 : f32 to vector<8x128xf32>
    %36 = arith.mulf %35, %34 : vector<8x128xf32>
    %cst_8 = arith.constant 1.000000e+00 : f32
    %37 = vector.broadcast %cst_8 : f32 to vector<8x128xf32>
    %38 = arith.subf %37, %36 : vector<8x128xf32>
    %39 = arith.mulf %23, %23 : vector<8x128xf32>
    %cst_9 = arith.constant 1.000000e+00 : f32
    %40 = vector.broadcast %cst_9 : f32 to vector<8x128xf32>
    %41 = arith.subf %40, %39 : vector<8x128xf32>
    %cst_10 = arith.constant 0.000000e+00 : f32
    %42 = vector.broadcast %cst_10 : f32 to vector<8x128xf32>
    %43 = arith.maximumf %41, %42 : vector<8x128xf32>
    %44 = math.sqrt %43 : vector<8x128xf32>
    %45 = arith.mulf %38, %44 : vector<8x128xf32>
    %cst_11 = arith.constant 2.000000e+00 : f32
    %46 = vector.broadcast %cst_11 : f32 to vector<8x128xf32>
    %47 = arith.mulf %46, %23 : vector<8x128xf32>
    %48 = arith.mulf %47, %45 : vector<8x128xf32>
    %cst_12 = arith.constant 2.000000e+00 : f32
    %49 = vector.broadcast %cst_12 : f32 to vector<8x128xf32>
    %50 = arith.mulf %49, %23 : vector<8x128xf32>
    %51 = arith.mulf %50, %23 : vector<8x128xf32>
    %52 = arith.mulf %17, %17 : vector<8x128xf32>
    %53 = arith.mulf %18, %18 : vector<8x128xf32>
    %54 = arith.mulf %19, %19 : vector<8x128xf32>
    %cst_13 = arith.constant 1.000000e+00 : f32
    %55 = vector.broadcast %cst_13 : f32 to vector<8x128xf32>
    %56 = arith.subf %52, %55 : vector<8x128xf32>
    %cst_14 = arith.constant 1.000000e+00 : f32
    %57 = vector.broadcast %cst_14 : f32 to vector<8x128xf32>
    %58 = arith.subf %53, %57 : vector<8x128xf32>
    %cst_15 = arith.constant 1.000000e+00 : f32
    %59 = vector.broadcast %cst_15 : f32 to vector<8x128xf32>
    %60 = arith.subf %54, %59 : vector<8x128xf32>
    %61 = arith.mulf %17, %18 : vector<8x128xf32>
    %62 = arith.mulf %17, %19 : vector<8x128xf32>
    %63 = arith.mulf %18, %19 : vector<8x128xf32>
    %64 = arith.mulf %48, %17 : vector<8x128xf32>
    %65 = arith.mulf %48, %18 : vector<8x128xf32>
    %66 = arith.mulf %48, %19 : vector<8x128xf32>
    %67 = arith.mulf %51, %61 : vector<8x128xf32>
    %68 = arith.mulf %51, %62 : vector<8x128xf32>
    %69 = arith.mulf %51, %63 : vector<8x128xf32>
    %70 = arith.mulf %51, %56 : vector<8x128xf32>
    %cst_16 = arith.constant 1.000000e+00 : f32
    %71 = vector.broadcast %cst_16 : f32 to vector<8x128xf32>
    %72 = arith.addf %71, %70 : vector<8x128xf32>
    %73 = arith.subf %67, %66 : vector<8x128xf32>
    %74 = arith.addf %68, %65 : vector<8x128xf32>
    %75 = arith.addf %67, %66 : vector<8x128xf32>
    %76 = arith.mulf %51, %58 : vector<8x128xf32>
    %cst_17 = arith.constant 1.000000e+00 : f32
    %77 = vector.broadcast %cst_17 : f32 to vector<8x128xf32>
    %78 = arith.addf %77, %76 : vector<8x128xf32>
    %79 = arith.subf %69, %64 : vector<8x128xf32>
    %80 = arith.subf %68, %65 : vector<8x128xf32>
    %81 = arith.addf %69, %64 : vector<8x128xf32>
    %82 = arith.mulf %51, %60 : vector<8x128xf32>
    %cst_18 = arith.constant 1.000000e+00 : f32
    %83 = vector.broadcast %cst_18 : f32 to vector<8x128xf32>
    %84 = arith.addf %83, %82 : vector<8x128xf32>
    %c0_19 = arith.constant 0 : index
    %85 = arith.index_cast %1 : i32 to index
    %c0_20 = arith.constant 0 : index
    %86 = vector.load %arg2[%c0_19, %85, %c0_20] : memref<9x8x128xf32, #tpu.memory_space<vmem>>, vector<1x8x128xf32>
    %87 = vector.shape_cast %86 : vector<1x8x128xf32> to vector<8x128xf32>
    %c1_21 = arith.constant 1 : index
    %88 = arith.index_cast %1 : i32 to index
    %c0_22 = arith.constant 0 : index
    %89 = vector.load %arg2[%c1_21, %88, %c0_22] : memref<9x8x128xf32, #tpu.memory_space<vmem>>, vector<1x8x128xf32>
    %90 = vector.shape_cast %89 : vector<1x8x128xf32> to vector<8x128xf32>
    %c2_23 = arith.constant 2 : index
    %91 = arith.index_cast %1 : i32 to index
    %c0_24 = arith.constant 0 : index
    %92 = vector.load %arg2[%c2_23, %91, %c0_24] : memref<9x8x128xf32, #tpu.memory_space<vmem>>, vector<1x8x128xf32>
    %93 = vector.shape_cast %92 : vector<1x8x128xf32> to vector<8x128xf32>
    %94 = arith.mulf %87, %72 : vector<8x128xf32>
    %95 = arith.mulf %90, %75 : vector<8x128xf32>
    %96 = arith.addf %94, %95 : vector<8x128xf32>
    %97 = arith.mulf %93, %80 : vector<8x128xf32>
    %98 = arith.addf %96, %97 : vector<8x128xf32>
    %c0_25 = arith.constant 0 : index
    %99 = arith.index_cast %1 : i32 to index
    %c0_26 = arith.constant 0 : index
    %100 = vector.load %arg3[%c0_25, %99, %c0_26] : memref<9x8x128xf32, #tpu.memory_space<vmem>>, vector<1x8x128xf32>
    %101 = vector.shape_cast %100 : vector<1x8x128xf32> to vector<8x128xf32>
    %102 = vector.shape_cast %98 : vector<8x128xf32> to vector<1x8x128xf32>
    tpu.vector_store %arg3[%c0_25, %99, %c0_26], %102 {strides = array<i32>} : memref<9x8x128xf32, #tpu.memory_space<vmem>>, vector<1x8x128xf32>,
    %103 = arith.mulf %87, %73 : vector<8x128xf32>
    %104 = arith.mulf %90, %78 : vector<8x128xf32>
    %105 = arith.addf %103, %104 : vector<8x128xf32>
    %106 = arith.mulf %93, %81 : vector<8x128xf32>
    %107 = arith.addf %105, %106 : vector<8x128xf32>
    %c1_27 = arith.constant 1 : index
    %108 = arith.index_cast %1 : i32 to index
    %c0_28 = arith.constant 0 : index
    %109 = vector.load %arg3[%c1_27, %108, %c0_28] : memref<9x8x128xf32, #tpu.memory_space<vmem>>, vector<1x8x128xf32>
    %110 = vector.shape_cast %109 : vector<1x8x128xf32> to vector<8x128xf32>
    %111 = vector.shape_cast %107 : vector<8x128xf32> to vector<1x8x128xf32>
    tpu.vector_store %arg3[%c1_27, %108, %c0_28], %111 {strides = array<i32>} : memref<9x8x128xf32, #tpu.memory_space<vmem>>, vector<1x8x128xf32>,
    %112 = arith.mulf %87, %74 : vector<8x128xf32>
    %113 = arith.mulf %90, %79 : vector<8x128xf32>
    %114 = arith.addf %112, %113 : vector<8x128xf32>
    %115 = arith.mulf %93, %84 : vector<8x128xf32>
    %116 = arith.addf %114, %115 : vector<8x128xf32>
    %c2_29 = arith.constant 2 : index
    %117 = arith.index_cast %1 : i32 to index
    %c0_30 = arith.constant 0 : index
    %118 = vector.load %arg3[%c2_29, %117, %c0_30] : memref<9x8x128xf32, #tpu.memory_space<vmem>>, vector<1x8x128xf32>
    %119 = vector.shape_cast %118 : vector<1x8x128xf32> to vector<8x128xf32>
    %120 = vector.shape_cast %116 : vector<8x128xf32> to vector<1x8x128xf32>
    tpu.vector_store %arg3[%c2_29, %117, %c0_30], %120 {strides = array<i32>} : memref<9x8x128xf32, #tpu.memory_space<vmem>>, vector<1x8x128xf32>,
    %c3 = arith.constant 3 : index
    %121 = arith.index_cast %1 : i32 to index
    %c0_31 = arith.constant 0 : index
    %122 = vector.load %arg2[%c3, %121, %c0_31] : memref<9x8x128xf32, #tpu.memory_space<vmem>>, vector<1x8x128xf32>
    %123 = vector.shape_cast %122 : vector<1x8x128xf32> to vector<8x128xf32>
    %c4 = arith.constant 4 : index
    %124 = arith.index_cast %1 : i32 to index
    %c0_32 = arith.constant 0 : index
    %125 = vector.load %arg2[%c4, %124, %c0_32] : memref<9x8x128xf32, #tpu.memory_space<vmem>>, vector<1x8x128xf32>
    %126 = vector.shape_cast %125 : vector<1x8x128xf32> to vector<8x128xf32>
    %c5 = arith.constant 5 : index
    %127 = arith.index_cast %1 : i32 to index
    %c0_33 = arith.constant 0 : index
    %128 = vector.load %arg2[%c5, %127, %c0_33] : memref<9x8x128xf32, #tpu.memory_space<vmem>>, vector<1x8x128xf32>
    %129 = vector.shape_cast %128 : vector<1x8x128xf32> to vector<8x128xf32>
    %130 = arith.mulf %123, %72 : vector<8x128xf32>
    %131 = arith.mulf %126, %75 : vector<8x128xf32>
    %132 = arith.addf %130, %131 : vector<8x128xf32>
    %133 = arith.mulf %129, %80 : vector<8x128xf32>
    %134 = arith.addf %132, %133 : vector<8x128xf32>
    %c3_34 = arith.constant 3 : index
    %135 = arith.index_cast %1 : i32 to index
    %c0_35 = arith.constant 0 : index
    %136 = vector.load %arg3[%c3_34, %135, %c0_35] : memref<9x8x128xf32, #tpu.memory_space<vmem>>, vector<1x8x128xf32>
    %137 = vector.shape_cast %136 : vector<1x8x128xf32> to vector<8x128xf32>
    %138 = vector.shape_cast %134 : vector<8x128xf32> to vector<1x8x128xf32>
    tpu.vector_store %arg3[%c3_34, %135, %c0_35], %138 {strides = array<i32>} : memref<9x8x128xf32, #tpu.memory_space<vmem>>, vector<1x8x128xf32>,
    %139 = arith.mulf %123, %73 : vector<8x128xf32>
    %140 = arith.mulf %126, %78 : vector<8x128xf32>
    %141 = arith.addf %139, %140 : vector<8x128xf32>
    %142 = arith.mulf %129, %81 : vector<8x128xf32>
    %143 = arith.addf %141, %142 : vector<8x128xf32>
    %c4_36 = arith.constant 4 : index
    %144 = arith.index_cast %1 : i32 to index
    %c0_37 = arith.constant 0 : index
    %145 = vector.load %arg3[%c4_36, %144, %c0_37] : memref<9x8x128xf32, #tpu.memory_space<vmem>>, vector<1x8x128xf32>
    %146 = vector.shape_cast %145 : vector<1x8x128xf32> to vector<8x128xf32>
    %147 = vector.shape_cast %143 : vector<8x128xf32> to vector<1x8x128xf32>
    tpu.vector_store %arg3[%c4_36, %144, %c0_37], %147 {strides = array<i32>} : memref<9x8x128xf32, #tpu.memory_space<vmem>>, vector<1x8x128xf32>,
    %148 = arith.mulf %123, %74 : vector<8x128xf32>
    %149 = arith.mulf %126, %79 : vector<8x128xf32>
    %150 = arith.addf %148, %149 : vector<8x128xf32>
    %151 = arith.mulf %129, %84 : vector<8x128xf32>
    %152 = arith.addf %150, %151 : vector<8x128xf32>
    %c5_38 = arith.constant 5 : index
    %153 = arith.index_cast %1 : i32 to index
    %c0_39 = arith.constant 0 : index
    %154 = vector.load %arg3[%c5_38, %153, %c0_39] : memref<9x8x128xf32, #tpu.memory_space<vmem>>, vector<1x8x128xf32>
    %155 = vector.shape_cast %154 : vector<1x8x128xf32> to vector<8x128xf32>
    %156 = vector.shape_cast %152 : vector<8x128xf32> to vector<1x8x128xf32>
    tpu.vector_store %arg3[%c5_38, %153, %c0_39], %156 {strides = array<i32>} : memref<9x8x128xf32, #tpu.memory_space<vmem>>, vector<1x8x128xf32>,
    %c6 = arith.constant 6 : index
    %157 = arith.index_cast %1 : i32 to index
    %c0_40 = arith.constant 0 : index
    %158 = vector.load %arg2[%c6, %157, %c0_40] : memref<9x8x128xf32, #tpu.memory_space<vmem>>, vector<1x8x128xf32>
    %159 = vector.shape_cast %158 : vector<1x8x128xf32> to vector<8x128xf32>
    %c7 = arith.constant 7 : index
    %160 = arith.index_cast %1 : i32 to index
    %c0_41 = arith.constant 0 : index
    %161 = vector.load %arg2[%c7, %160, %c0_41] : memref<9x8x128xf32, #tpu.memory_space<vmem>>, vector<1x8x128xf32>
    %162 = vector.shape_cast %161 : vector<1x8x128xf32> to vector<8x128xf32>
    %c8 = arith.constant 8 : index
    %163 = arith.index_cast %1 : i32 to index
    %c0_42 = arith.constant 0 : index
    %164 = vector.load %arg2[%c8, %163, %c0_42] : memref<9x8x128xf32, #tpu.memory_space<vmem>>, vector<1x8x128xf32>
    %165 = vector.shape_cast %164 : vector<1x8x128xf32> to vector<8x128xf32>
    %166 = arith.mulf %159, %72 : vector<8x128xf32>
    %167 = arith.mulf %162, %75 : vector<8x128xf32>
    %168 = arith.addf %166, %167 : vector<8x128xf32>
    %169 = arith.mulf %165, %80 : vector<8x128xf32>
    %170 = arith.addf %168, %169 : vector<8x128xf32>
    %c6_43 = arith.constant 6 : index
    %171 = arith.index_cast %1 : i32 to index
    %c0_44 = arith.constant 0 : index
    %172 = vector.load %arg3[%c6_43, %171, %c0_44] : memref<9x8x128xf32, #tpu.memory_space<vmem>>, vector<1x8x128xf32>
    %173 = vector.shape_cast %172 : vector<1x8x128xf32> to vector<8x128xf32>
    %174 = vector.shape_cast %170 : vector<8x128xf32> to vector<1x8x128xf32>
    tpu.vector_store %arg3[%c6_43, %171, %c0_44], %174 {strides = array<i32>} : memref<9x8x128xf32, #tpu.memory_space<vmem>>, vector<1x8x128xf32>,
    %175 = arith.mulf %159, %73 : vector<8x128xf32>
    %176 = arith.mulf %162, %78 : vector<8x128xf32>
    %177 = arith.addf %175, %176 : vector<8x128xf32>
    %178 = arith.mulf %165, %81 : vector<8x128xf32>
    %179 = arith.addf %177, %178 : vector<8x128xf32>
    %c7_45 = arith.constant 7 : index
    %180 = arith.index_cast %1 : i32 to index
    %c0_46 = arith.constant 0 : index
    %181 = vector.load %arg3[%c7_45, %180, %c0_46] : memref<9x8x128xf32, #tpu.memory_space<vmem>>, vector<1x8x128xf32>
    %182 = vector.shape_cast %181 : vector<1x8x128xf32> to vector<8x128xf32>
    %183 = vector.shape_cast %179 : vector<8x128xf32> to vector<1x8x128xf32>
    tpu.vector_store %arg3[%c7_45, %180, %c0_46], %183 {strides = array<i32>} : memref<9x8x128xf32, #tpu.memory_space<vmem>>, vector<1x8x128xf32>,
    %184 = arith.mulf %159, %74 : vector<8x128xf32>
    %185 = arith.mulf %162, %79 : vector<8x128xf32>
    %186 = arith.addf %184, %185 : vector<8x128xf32>
    %187 = arith.mulf %165, %84 : vector<8x128xf32>
    %188 = arith.addf %186, %187 : vector<8x128xf32>
    %c8_47 = arith.constant 8 : index
    %189 = arith.index_cast %1 : i32 to index
    %c0_48 = arith.constant 0 : index
    %190 = vector.load %arg3[%c8_47, %189, %c0_48] : memref<9x8x128xf32, #tpu.memory_space<vmem>>, vector<1x8x128xf32>
    %191 = vector.shape_cast %190 : vector<1x8x128xf32> to vector<8x128xf32>
    %192 = vector.shape_cast %188 : vector<8x128xf32> to vector<1x8x128xf32>
    tpu.vector_store %arg3[%c8_47, %189, %c0_48], %192 {strides = array<i32>} : memref<9x8x128xf32, #tpu.memory_space<vmem>>, vector<1x8x128xf32>,
    %c1_i32 = arith.constant 1 : i32
    return
  }
  func.func @transform_0(%arg0: i32) -> (i32, i32, i32) {
    %c0_i32 = arith.constant 0 : i32
    %c0_i32_0 = arith.constant 0 : i32
    %c0_i32_1 = arith.constant 0 : i32
    return %c0_i32, %arg0, %c0_i32_0 : i32, i32, i32
  }
  func.func @transform_1(%arg0: i32) -> (i32, i32, i32) {
    %c0_i32 = arith.constant 0 : i32
    %c0_i32_0 = arith.constant 0 : i32
    %c0_i32_1 = arith.constant 0 : i32
    return %c0_i32, %arg0, %c0_i32_0 : i32, i32, i32
  }
  func.func @transform_2(%arg0: i32) -> (i32, i32, i32) {
    %c0_i32 = arith.constant 0 : i32
    %c0_i32_0 = arith.constant 0 : i32
    %c0_i32_1 = arith.constant 0 : i32
    return %c0_i32, %arg0, %c0_i32_0 : i32, i32, i32
  }
}

</mosaic_0001>

<llo_original>
// kernel: tpu_custom_call.1
$region0: #{tpu_custom_call.1}
  #allocation0 [shape = 'u32[]', space=smem, size = 0x4, offset = 0x4, fixed_abs, tag = 'smem constant byte address 0x4 - core index']
  #allocation1 [shape = 'u32[144,128]{1,0:T(1,128)}', space=vmem, size = 0x12000, scoped, tag = 'internal scratch']
  #allocation8 [shape = 's32[]', space=sflag, size = 0x4, offset = 0, fixed_abs, tag = 'sflag constant byte address 0x0 - dummy sync flag']
  #allocation10 [shape = 's32[]', space=sflag, size = 0x4, offset = 0, fixed_abs, tag = 'sflag constant byte address 0x0 - dummy sync flag']
  #allocation12 [shape = 's32[]', space=sflag, size = 0x4, offset = 0, fixed_abs, tag = 'sflag constant byte address 0x0 - dummy sync flag']
  %s0 = inlined_call_operand.hbm [shape: f32[3,1,128], index: 0, kind: input, shape index: {}]
  %s1 = inlined_call_operand.hbm [shape: f32[9,1,128], index: 1, kind: input, shape index: {}]
  %s2 = inlined_call_operand.hbm [shape: f32[9,1,128], index: 2, kind: output, shape index: {}]
  %s3 = sld [smem:[#allocation0]]
  $region26: #{tpu_custom_call.1} parent=0
    _
  %s5 = ssub.s32 1, %s3
  %s6 = scalar_select 0, %s5, %s3
  $region1: #{tpu_custom_call.1} parent=0
    #allocation2 [shape = 'u8[12288]{0}', space=vmem, size = 0x3000, scoped, tag = 'input window, operand 0, single buffered']
    #allocation3 [shape = 's32[1]{0}', space=sflag, size = 0x4, scoped, tag = 'scoped memory for tpu_custom_call.1']
    #allocation4 [shape = 's32[1]{0}', space=sflag, size = 0x4, scoped, tag = 'scoped memory for tpu_custom_call.1']
    #allocation5 [shape = 'u8[36864]{0}', space=vmem, size = 0x9000, scoped, tag = 'input window, operand 1, single buffered']
    #allocation6 [shape = 's32[1]{0}', space=sflag, size = 0x4, scoped, tag = 'scoped memory for tpu_custom_call.1']
    #allocation7 [shape = 'u8[36864]{0}', space=vmem, size = 0x9000, scoped, tag = 'output window, operand 0, single buffered']
    %7 = vsyncpa [#allocation3], 0
    %8 = vsyncpa [#allocation6], 0
    %9 = vsyncpa [#allocation4], 0
    // Predicated region
    $region2: #{tpu_custom_call.1} parent=1 // pred_check
      _
    $region3: #{tpu_custom_call.1} parent=1 // pred_check_branch
      %11 = sbr.rel (0) target = $region5
    $region4: #{tpu_custom_call.1} parent=1 // pred_region
      #allocation9 [shape = 'u32[6]{0}', space=smem, size = 0x18, scoped, tag = 'DMA stride descriptor']
      %s13 = ssub.s32 384, 48
      %14 = vsyncadd [#allocation3], %s13
      %s16 = sshll.u32 1, 14
      %s17 = sxor.u32 4294967295, %s16
      %s19 = sld [smem:[#allocation0]]
      %s20 = sadd.s32 2, %s19
      %s22 = sshll.u32 7, 26
      %s23 = sxor.u32 4294967295, %s22
      %s24 = sand.u32 0, %s23
      %s25 = sshll.u32 %s20, 26
      %s26 = sor.u32 %s24, %s25
      %s27 = sshll.u32 [#allocation2], 4
      %s28 = int_to_ptr.vmem [resolvable:$true] %s27
      %34 = sst [smem:[#allocation9]] 16
      %s35 = scalar_lea.smem [#allocation9], 1
      %36 = sst [smem:[%s35]] 128
      %s37 = scalar_lea.smem [#allocation9], 2
      %38 = sst [smem:[%s37]] 1
      %s39 = scalar_lea.smem [#allocation9], 3
      %40 = sst [smem:[%s39]] 16
      %s41 = scalar_lea.smem [#allocation9], 4
      %42 = sst [smem:[%s41]] 16
      %s43 = scalar_lea.smem [#allocation9], 5
      %44 = sst [smem:[%s43]] 1
      %46 = dma.general %s0, 48, %s28, [#allocation3], [#allocation8], [#allocation9], %s26, 0
    $region5: #{tpu_custom_call.1} parent=1 // pred_fallthru
      _
    // Predicated region
    $region6: #{tpu_custom_call.1} parent=1 // pred_check
      _
    $region7: #{tpu_custom_call.1} parent=1 // pred_check_branch
      %48 = sbr.rel (0) target = $region9
    $region8: #{tpu_custom_call.1} parent=1 // pred_region
      #allocation11 [shape = 'u32[6]{0}', space=smem, size = 0x18, scoped, tag = 'DMA stride descriptor']
      %s50 = ssub.s32 1152, 144
      %51 = vsyncadd [#allocation6], %s50
      %s53 = sshll.u32 1, 14
      %s54 = sxor.u32 4294967295, %s53
      %s56 = sld [smem:[#allocation0]]
      %s57 = sadd.s32 2, %s56
      %s59 = sshll.u32 7, 26
      %s60 = sxor.u32 4294967295, %s59
      %s61 = sand.u32 0, %s60
      %s62 = sshll.u32 %s57, 26
      %s63 = sor.u32 %s61, %s62
      %s64 = sshll.u32 [#allocation5], 4
      %s65 = int_to_ptr.vmem [resolvable:$true] %s64
      %71 = sst [smem:[#allocation11]] 16
      %s72 = scalar_lea.smem [#allocation11], 1
      %73 = sst [smem:[%s72]] 128
      %s74 = scalar_lea.smem [#allocation11], 2
      %75 = sst [smem:[%s74]] 1
      %s76 = scalar_lea.smem [#allocation11], 3
      %77 = sst [smem:[%s76]] 16
      %s78 = scalar_lea.smem [#allocation11], 4
      %79 = sst [smem:[%s78]] 16
      %s80 = scalar_lea.smem [#allocation11], 5
      %81 = sst [smem:[%s80]] 1
      %83 = dma.general %s1, 144, %s65, [#allocation6], [#allocation10], [#allocation11], %s63, 0
    $region9: #{tpu_custom_call.1} parent=1 // pred_fallthru
      _
    // Predicated region
    $region10: #{tpu_custom_call.1} parent=1 // pred_check
      _
    $region11: #{tpu_custom_call.1} parent=1 // pred_check_branch
      %85 = sbr.rel (0) target = $region13
    $region12: #{tpu_custom_call.1} parent=1 // pred_region
      %86 = dma.done [#allocation3], 384
    $region13: #{tpu_custom_call.1} parent=1 // pred_fallthru
      _
    // Predicated region
    $region14: #{tpu_custom_call.1} parent=1 // pred_check
      _
    $region15: #{tpu_custom_call.1} parent=1 // pred_check_branch
      %88 = sbr.rel (0) target = $region17
    $region16: #{tpu_custom_call.1} parent=1 // pred_region
      %89 = dma.done [#allocation6], 1152
    $region17: #{tpu_custom_call.1} parent=1 // pred_fallthru
      _
    %v90 = vld [vmem:[#allocation2] sm:$0xff]
    %s91 = sadd.s32 0, 8
    %s92 = scalar_lea.vmem [#allocation2], %s91
    %v93 = vld [vmem:[%s92] sm:$0xff]
    %s94 = sadd.s32 0, 16
    %s95 = scalar_lea.vmem [#allocation2], %s94
    %v96 = vld [vmem:[%s95] sm:$0xff]
    %v97 = vmul.f32 %v90, %v90
    %v98 = vmul.f32 %v93, %v93
    %v99 = vadd.f32 %v97, %v98
    %v100 = vmul.f32 %v96, %v96
    %v101 = vadd.f32 %v99, %v100
    %v102 = vrsqrt.pop %v101
    %v103 = vmul.f32 %v90, %v102
    %v104 = vmul.f32 %v93, %v102
    %v105 = vmul.f32 %v96, %v102
    %v106 = vmul.f32 %v101, %v102
    %v107 = vmul.f32 %v106, 0.5
    %v108 = vand.u32 2147483647, %v107
    %vm109 = vcmp.le.f32.partialorder %v108, 0.7853982
    %vm110 = vcmp.lt.s32.totalorder %v107, 0
    %v111 = vand.u32 %v107, 2139095040
    %v112 = vshrl.u32 %v111, 23
    %v113 = vsub.s32 %v112, 127
    %v114 = vand.u32 2147483647, %v107
    %v115 = vand.u32 %v114, 8388607
    %v116 = vor.u32 %v115, 8388608
    %v117 = vsub.s32 0, %v116
    %v118 = vadd.s32 %v113, 1
    %vm119 = vcmp.gt.s32.totalorder %v118, 0
    %v120 = vsel %vm119, %v118, 0
    %v121 = vshrl.u32 %v120, 5
    %v122 = vand.u32 %v120, 31
    %v123 = vsub.s32 32, %v122
    %v124 = vshrl.u32 683565275, %v123
    %v125 = vshll.u32 683565275, %v122
    %v126 = vshrl.u32 2475754826, %v123
    %v127 = vor.u32 %v125, %v126
    %v128 = vshll.u32 2475754826, %v122
    %v129 = vshrl.u32 2131351028, %v123
    %v130 = vor.u32 %v128, %v129
    %v131 = vshll.u32 2131351028, %v122
    %v132 = vshrl.u32 2102212464, %v123
    %v133 = vor.u32 %v131, %v132
    %v134 = vshll.u32 2102212464, %v122
    %v135 = vshrl.u32 920167782, %v123
    %v136 = vor.u32 %v134, %v135
    %v137 = vshll.u32 920167782, %v122
    %v138 = vshrl.u32 1326507024, %v123
    %v139 = vor.u32 %v137, %v138
    %vm140 = vcmp.lt.s32.totalorder %v121, 1
    %vm141 = vcmp.lt.s32.totalorder %v121, 2
    %vm142 = vcmp.lt.s32.totalorder %v121, 3
    %vm143 = vcmp.lt.s32.totalorder %v121, 4
    %v144 = vsel %vm140, %v124, %v127
    %v145 = vsel %vm143, %v133, 2102212464
    %v146 = vsel %vm142, %v130, %v145
    %v147 = vsel %vm141, %v144, %v146
    %v148 = vsel %vm140, %v127, %v130
    %v149 = vsel %vm143, %v136, 920167782
    %v150 = vsel %vm142, %v133, %v149
    %v151 = vsel %vm141, %v148, %v150
    %v152 = vsel %vm140, %v130, %v133
    %v153 = vsel %vm143, %v139, 1326507024
    %v154 = vsel %vm142, %v136, %v153
    %v155 = vsel %vm141, %v152, %v154
    %v156 = vshll.u32 %v116, 8
    %v157 = vmul.u32.u64.compose %v156, %v155
    %v158 = vextract.low.u32 %v157
    %v159 = vextract.high.u32 %v157
    %v160 = vmul.u32.u64.compose %v156, %v151
    %v161 = vextract.low.u32 %v160
    %v162 = vextract.high.u32 %v160
    %v163 = vmul.u32 %v156, %v147
    %v164 = vadd.s32 %v159, %v161
    %vm165 = vc.u32 %v159, %v161
    %v166 = vadd.s32 %v162, 1
    %v167 = vsel %vm165, %v166, %v162
    %v168 = vadd.s32 %v163, %v167
    %v169 = vadd.s32 %v168, 536870912
    %v170 = vshrl.u32 %v169, 30
    %v171 = vshll.u32 %v170, 30
    %v172 = vsub.s32 %v168, %v171
    %vm173 = vcmp.lt.s32.totalorder %v172, 0
    %v174 = vsub.s32 0, %v172
    %v175 = vsel %vm173, %v174, %v172
    %v176 = vclz %v175
    %v177 = vsub.s32 %v176, 2
    %vm178 = vcmp.gt.s32.totalorder 0, %v177
    %v179 = vsel %vm178, 0, %v177
    %v180 = vsub.s32 32, %v179
    %v181 = vshll.u32 %v172, %v179
    %v182 = vshrl.u32 %v164, %v180
    %v183 = vor.u32 %v181, %v182
    %v184 = vsub.s32 4294967266, %v179
    %v185 = vadd.s32 %v184, 127
    %v186 = vshll.u32 %v185, 23
    %v187 = vor.u32 4788187, %v186
    %v188 = vand.u32 2147483647, %v187
    %v190 = vcvt.s32.f32 %v183
    %v191 = vmul.f32 %v190, %v188
    %v192 = vxor.u32 %v191, 2147483648
    %v193 = vsel %vm110, %v192, %v191
    %v194 = vsub.s32 4, %v170
    %v195 = vsel %vm110, %v194, %v170
    %v196 = vsel %vm109, %v107, %v193
    %v197 = vsel %vm109, 0, %v195
    %v198 = vcosq.f32.pop %v196
    %v199 = vsinq.f32.pop %v196
    %vm200 = vweird.f32 %v107
    %v201 = vadd.s32 %v197, 3
    %v202 = vand.u32 %v201, 3
    %vm203 = vcmp.lt.s32.totalorder %v202, 2
    %vm204 = vcmp.eq.s32.totalorder %v202, 0
    %v205 = vxor.u32 %v199, 2147483648
    %v206 = vsel %vm204, %v198, %v205
    %vm207 = vcmp.eq.s32.totalorder %v202, 2
    %v208 = vxor.u32 %v198, 2147483648
    %v209 = vsel %vm207, %v208, %v199
    %v210 = vsel %vm203, %v206, %v209
    %v211 = vsel %vm200, nan, %v210
    %v212 = vadd.f32 %v107, 1.5707964
    %v213 = vmul.f32 %v212, 0.31830987
    %v214 = vfloor.f32 %v213
    %v215 = vmul.f32 %v214, 0.5
    %v216 = vfloor.f32 %v215
    %v217 = vmul.f32 %v216, 2.0
    %v218 = vsub.f32 %v214, %v217
    %v219 = vmul.f32 %v218, 2.0
    %v220 = vsub.f32 1.0, %v219
    %v221 = vmul.f32 %v211, %v211
    %v222 = vsub.f32 1.0, %v221
    %v223 = vmax.f32 %v222, 0.0
    %v224 = vrsqrt.pop %v223
    %v225 = vmul.f32 %v223, %v224
    %vm226 = vcmp.eq.f32.partialorder %v223, inf
    %v227 = vsel %vm226, %v223, %v225
    %vm228 = vcmp.eq.f32.partialorder %v223, 0.0
    %v229 = vand.u32 %v223, 2147483648
    %v230 = vsel %vm228, %v229, %v227
    %v231 = vmul.f32 %v220, %v230
    %v232 = vmul.f32 %v211, 2.0
    %v233 = vmul.f32 %v232, %v231
    %v234 = vmul.f32 %v232, %v211
    %v235 = vmul.f32 %v103, %v103
    %v236 = vmul.f32 %v104, %v104
    %v237 = vmul.f32 %v105, %v105
    %v238 = vsub.f32 %v235, 1.0
    %v239 = vsub.f32 %v236, 1.0
    %v240 = vsub.f32 %v237, 1.0
    %v241 = vmul.f32 %v103, %v104
    %v242 = vmul.f32 %v103, %v105
    %v243 = vmul.f32 %v104, %v105
    %v244 = vmul.f32 %v233, %v103
    %v245 = vmul.f32 %v233, %v104
    %v246 = vmul.f32 %v233, %v105
    %v247 = vmul.f32 %v234, %v241
    %v248 = vmul.f32 %v234, %v242
    %v249 = vmul.f32 %v234, %v243
    %v250 = vmul.f32 %v234, %v238
    %v251 = vadd.f32 %v250, 1.0
    %v252 = vsub.f32 %v247, %v246
    %v253 = vadd.f32 %v248, %v245
    %v254 = vadd.f32 %v247, %v246
    %v255 = vmul.f32 %v234, %v239
    %v256 = vadd.f32 %v255, 1.0
    %v257 = vsub.f32 %v249, %v244
    %v258 = vsub.f32 %v248, %v245
    %v259 = vadd.f32 %v249, %v244
    %v260 = vmul.f32 %v234, %v240
    %v261 = vadd.f32 %v260, 1.0
    %v262 = vld [vmem:[#allocation5] sm:$0xff]
    %s263 = scalar_lea.vmem [#allocation5], %s91
    %v264 = vld [vmem:[%s263] sm:$0xff]
    %s265 = scalar_lea.vmem [#allocation5], %s94
    %v266 = vld [vmem:[%s265] sm:$0xff]
    %v267 = vmul.f32 %v262, %v251
    %v268 = vmul.f32 %v264, %v254
    %v269 = vadd.f32 %v267, %v268
    %v270 = vmul.f32 %v266, %v258
    %v271 = vadd.f32 %v269, %v270
    %272 = vst [vmem:[#allocation7] sm:$0xff] %v271
    %v273 = vmul.f32 %v262, %v252
    %v274 = vmul.f32 %v264, %v256
    %v275 = vadd.f32 %v273, %v274
    %v276 = vmul.f32 %v266, %v259
    %v277 = vadd.f32 %v275, %v276
    %s278 = scalar_lea.vmem [#allocation7], %s91
    %279 = vst [vmem:[%s278] sm:$0xff] %v277
    %v280 = vmul.f32 %v262, %v253
    %v281 = vmul.f32 %v264, %v257
    %v282 = vadd.f32 %v280, %v281
    %v283 = vmul.f32 %v266, %v261
    %v284 = vadd.f32 %v282, %v283
    %s285 = scalar_lea.vmem [#allocation7], %s94
    %286 = vst [vmem:[%s285] sm:$0xff] %v284
    %s287 = sadd.s32 0, 24
    %s288 = scalar_lea.vmem [#allocation5], %s287
    %v289 = vld [vmem:[%s288] sm:$0xff]
    %s290 = sadd.s32 0, 32
    %s291 = scalar_lea.vmem [#allocation5], %s290
    %v292 = vld [vmem:[%s291] sm:$0xff]
    %s293 = sadd.s32 0, 40
    %s294 = scalar_lea.vmem [#allocation5], %s293
    %v295 = vld [vmem:[%s294] sm:$0xff]
    %v296 = vmul.f32 %v289, %v251
    %v297 = vmul.f32 %v292, %v254
    %v298 = vadd.f32 %v296, %v297
    %v299 = vmul.f32 %v295, %v258
    %v300 = vadd.f32 %v298, %v299
    %s301 = scalar_lea.vmem [#allocation7], %s287
    %302 = vst [vmem:[%s301] sm:$0xff] %v300
    %v303 = vmul.f32 %v289, %v252
    %v304 = vmul.f32 %v292, %v256
    %v305 = vadd.f32 %v303, %v304
    %v306 = vmul.f32 %v295, %v259
    %v307 = vadd.f32 %v305, %v306
    %s308 = scalar_lea.vmem [#allocation7], %s290
    %309 = vst [vmem:[%s308] sm:$0xff] %v307
    %v310 = vmul.f32 %v289, %v253
    %v311 = vmul.f32 %v292, %v257
    %v312 = vadd.f32 %v310, %v311
    %v313 = vmul.f32 %v295, %v261
    %v314 = vadd.f32 %v312, %v313
    %s315 = scalar_lea.vmem [#allocation7], %s293
    %316 = vst [vmem:[%s315] sm:$0xff] %v314
    %s317 = sadd.s32 0, 48
    %s318 = scalar_lea.vmem [#allocation5], %s317
    %v319 = vld [vmem:[%s318] sm:$0xff]
    %s320 = sadd.s32 0, 56
    %s321 = scalar_lea.vmem [#allocation5], %s320
    %v322 = vld [vmem:[%s321] sm:$0xff]
    %s323 = sadd.s32 0, 64
    %s324 = scalar_lea.vmem [#allocation5], %s323
    %v325 = vld [vmem:[%s324] sm:$0xff]
    %v326 = vmul.f32 %v319, %v251
    %v327 = vmul.f32 %v322, %v254
    %v328 = vadd.f32 %v326, %v327
    %v329 = vmul.f32 %v325, %v258
    %v330 = vadd.f32 %v328, %v329
    %s331 = scalar_lea.vmem [#allocation7], %s317
    %332 = vst [vmem:[%s331] sm:$0xff] %v330
    %v333 = vmul.f32 %v319, %v252
    %v334 = vmul.f32 %v322, %v256
    %v335 = vadd.f32 %v333, %v334
    %v336 = vmul.f32 %v325, %v259
    %v337 = vadd.f32 %v335, %v336
    %s338 = scalar_lea.vmem [#allocation7], %s320
    %339 = vst [vmem:[%s338] sm:$0xff] %v337
    %v340 = vmul.f32 %v319, %v253
    %v341 = vmul.f32 %v322, %v257
    %v342 = vadd.f32 %v340, %v341
    %v343 = vmul.f32 %v325, %v261
    %v344 = vadd.f32 %v342, %v343
    %s345 = scalar_lea.vmem [#allocation7], %s323
    %346 = vst [vmem:[%s345] sm:$0xff] %v344
    // Predicated region
    $region18: #{tpu_custom_call.1} parent=1 // pred_check
      _
    $region19: #{tpu_custom_call.1} parent=1 // pred_check_branch
      %348 = sbr.rel (0) target = $region21
    $region20: #{tpu_custom_call.1} parent=1 // pred_region
      #allocation13 [shape = 'u32[6]{0}', space=smem, size = 0x18, scoped, tag = 'DMA stride descriptor']
      %s350 = ssub.s32 1152, 144
      %351 = vsyncadd [#allocation4], %s350
      %s353 = sshll.u32 1, 14
      %s354 = sxor.u32 4294967295, %s353
      %s357 = sshll.u32 7, 18
      %s358 = sxor.u32 4294967295, %s357
      %s359 = sand.u32 0, %s358
      %s361 = sor.u32 %s359, 0
      %s363 = sshll.u32 3, 24
      %s364 = sxor.u32 4294967295, %s363
      %s365 = sand.u32 %s361, %s364
      %s367 = sor.u32 %s365, 0
      %s368 = sshll.u32 [#allocation7], 4
      %s369 = int_to_ptr.vmem [resolvable:$true] %s368
      %375 = sst [smem:[#allocation13]] 128
      %s376 = scalar_lea.smem [#allocation13], 1
      %377 = sst [smem:[%s376]] 16
      %s378 = scalar_lea.smem [#allocation13], 2
      %379 = sst [smem:[%s378]] 1
      %s380 = scalar_lea.smem [#allocation13], 3
      %381 = sst [smem:[%s380]] 16
      %s382 = scalar_lea.smem [#allocation13], 4
      %383 = sst [smem:[%s382]] 16
      %s384 = scalar_lea.smem [#allocation13], 5
      %385 = sst [smem:[%s384]] 1
      %387 = dma.general %s369, 144, %s2, [#allocation4], [#allocation12], [#allocation13], %s367, 0
    $region21: #{tpu_custom_call.1} parent=1 // pred_fallthru
      _
    // Predicated region
    $region22: #{tpu_custom_call.1} parent=1 // pred_check
      _
    $region23: #{tpu_custom_call.1} parent=1 // pred_check_branch
      %389 = sbr.rel (0) target = $region25
    $region24: #{tpu_custom_call.1} parent=1 // pred_region
      %390 = dma.done [#allocation4], 1152
    $region25: #{tpu_custom_call.1} parent=1 // pred_fallthru
      _
    %391 = vsyncpa [#allocation3], 1
    %392 = vsyncpa [#allocation6], 1
    %393 = vsyncpa [#allocation4], 1

</llo_original>
